<compile_context>
chip_gen: v7x
topology: tpu7x:2x2x1
jax: 0.10.0
libtpu: 0.0.40
codegen_flags: <defaults>
</compile_context>

<pallas_src>
import jax
import jax.numpy as jnp
from jax.experimental import pallas as pl
from jax.experimental.pallas import tpu as pltpu

IN_F, HID_F, OUT_F = 25, 16, 10

TB_TARGET = 16 * 1024   # default / maximum batch tile (rows); VMEM-safe on v5e/v6e/v7x
MIN_TB = 1024           # below this, per-step pipeline overhead dominates
MIN_STEPS = 8           # >= 4 grid steps per TensorCore after the megacore split


def _round_up(x, m):
    return ((x + m - 1) // m) * m


def _pick_tb(B, tb_req):
    """Pick the batch tile: as large as allowed, multiple of 16, but keep >=MIN_STEPS
    grid steps when the batch is big enough that each step still has >=MIN_TB rows."""
    tb = min(tb_req, TB_TARGET, _round_up(B, 16))
    tb = max(16, _round_up(tb, 16))
    cap = _round_up(pl.cdiv(B, MIN_STEPS), 16)
    if cap >= MIN_TB:
        tb = min(tb, cap)
    return tb


def mlp_kernel(x_ref, w1_ref, b1_ref, w2_ref, b2_ref, o_ref):
    # hot path: fc -> relu -> fc2; all tiles resident in VMEM, matmuls on the MXU,
    # f32 accumulation regardless of the streamed dtype.
    x = x_ref[...].astype(jnp.float32)                                   # (TB, 25)
    h = jnp.dot(x, w1_ref[...], preferred_element_type=jnp.float32)      # (TB, 16)
    h = jnp.maximum(h + b1_ref[...], 0.0)                                # bias + ReLU
    y = jnp.dot(h, w2_ref[...], preferred_element_type=jnp.float32)      # (TB, 10)
    o_ref[...] = (y + b2_ref[...]).astype(o_ref.dtype)


def simple_model_forward(x, w1, b1, w2, b2, *, tb=TB_TARGET):
    """x: (B, 25) f32 (or bf16).  w1: (25,16), b1: (16,), w2: (16,10), b2: (10,)."""
    B, K = x.shape
    H = w1.shape[1]
    N = w2.shape[1]

    TB = _pick_tb(B, tb)
    grid = (pl.cdiv(B, TB),)

    # Scoped-VMEM budget: x and out tiles are lane-padded to 128 lanes in VMEM
    # (512 B/row each at f32) and double-buffered by the pipeline; weights are tiny.
    tile_bytes = 2 * TB * (2 * 128 * 4)                   # 2 buffers * TB rows * (x + out)
    vmem_limit = max(32 << 20, min(int(tile_bytes * 1.25) + (2 << 20), 48 << 20))

    xbytes = x.dtype.itemsize
    cost = pl.CostEstimate(
        flops=2 * B * (K * H + H * N),
        transcendentals=0,
        bytes_accessed=xbytes * B * (K + N) + 4 * (K * H + H + H * N + N),
    )

    return pl.pallas_call(
        mlp_kernel,
        out_shape=jax.ShapeDtypeStruct((B, N), x.dtype),
        grid_spec=pltpu.PrefetchScalarGridSpec(
            num_scalar_prefetch=0,
            grid=grid,
            in_specs=[
                # x is streamed & double-buffered over the batch grid
                # (pipeline_mode=pl.Buffered(3) is the next knob if xprof still
                #  shows exposed DMA once TB is large).
                pl.BlockSpec((TB, K), lambda i: (i, 0)),
                # weights/biases: constant index_map -> fetched once, stay resident
                pl.BlockSpec((K, H), lambda i: (0, 0)),
                pl.BlockSpec((1, H), lambda i: (0, 0)),
                pl.BlockSpec((H, N), lambda i: (0, 0)),
                pl.BlockSpec((1, N), lambda i: (0, 0)),
            ],
            out_specs=pl.BlockSpec((TB, N), lambda i: (i, 0)),
        ),
        compiler_params=pltpu.CompilerParams(
            # batch axis is embarrassingly parallel -> megacore sharding on v7x
            dimension_semantics=("parallel",),
            vmem_limit_bytes=vmem_limit,
        ),
        cost_estimate=cost,
    )(x, w1, b1.reshape(1, -1), w2, b2.reshape(1, -1))


def init_params():
    """Deterministic init mimicking torch.nn.Linear default U(-1/sqrt(fan_in), 1/sqrt(fan_in))."""
    k = jax.random.PRNGKey(42)
    k1, k2, k3, k4 = jax.random.split(k, 4)
    bound1 = 1.0 / jnp.sqrt(float(IN_F))
    bound2 = 1.0 / jnp.sqrt(float(HID_F))
    # stored as (in, out) — i.e. transpose of PyTorch's (out, in) weight layout
    w1 = jax.random.uniform(k1, (IN_F, HID_F), jnp.float32, -bound1, bound1)
    b1 = jax.random.uniform(k2, (HID_F,), jnp.float32, -bound1, bound1)
    w2 = jax.random.uniform(k3, (HID_F, OUT_F), jnp.float32, -bound2, bound2)
    b2 = jax.random.uniform(k4, (OUT_F,), jnp.float32, -bound2, bound2)
    return w1, b1, w2, b2


def _reference(x, w1, b1, w2, b2):
    return jnp.maximum(x @ w1 + b1, 0.0) @ w2 + b2


if __name__ == "__main__":
    w1, b1, w2, b2 = init_params()

    # Primary check (batch=2, in_features=25), matching the module's forward.
    B = 2
    x = jax.random.normal(jax.random.PRNGKey(0), (B, IN_F), jnp.float32)
    out = simple_model_forward(x, w1, b1, w2, b2)
    jax.block_until_ready(out)
    ref = _reference(x, w1, b1, w2, b2)
    assert out.shape == (B, OUT_F)
    assert jnp.allclose(out, ref, atol=1e-5), "mismatch vs reference (small batch)"

    # Explicit-tile check: multi-step batch grid + ragged last tile.
    B2 = 300
    x2 = jax.random.normal(jax.random.PRNGKey(1), (B2, IN_F), jnp.float32)
    out2 = simple_model_forward(x2, w1, b1, w2, b2, tb=128)   # grid = 3, last tile partial
    jax.block_until_ready(out2)
    ref2 = _reference(x2, w1, b1, w2, b2)
    assert out2.shape == (B2, OUT_F)
    assert jnp.allclose(out2, ref2, atol=1e-5), "mismatch vs reference (tiled batch)"

    # Default-picker check: exercises the >=MIN_STEPS cap (TB=1504, grid=8, ragged).
    B3 = 12000
    x3 = jax.random.normal(jax.random.PRNGKey(2), (B3, IN_F), jnp.float32)
    out3 = simple_model_forward(x3, w1, b1, w2, b2)
    jax.block_until_ready(out3)
    ref3 = _reference(x3, w1, b1, w2, b2)
    assert out3.shape == (B3, OUT_F)
    assert jnp.allclose(out3, ref3, atol=1e-4), "mismatch vs reference (default tiles)"

    print("KERNEL_OK")
</pallas_src>

<mosaic_0001>
module attributes {stable_mosaic.version = 11 : i64} {
  func.func @mlp_kernel(%arg0: i32, %arg1: memref<16x25xf32, #tpu.memory_space<vmem>>, %arg2: memref<25x16xf32, #tpu.memory_space<vmem>>, %arg3: memref<1x16xf32, #tpu.memory_space<vmem>>, %arg4: memref<16x10xf32, #tpu.memory_space<vmem>>, %arg5: memref<1x10xf32, #tpu.memory_space<vmem>>, %arg6: memref<16x10xf32, #tpu.memory_space<vmem>>) attributes {dimension_semantics = [#tpu.dimension_semantics<parallel>], iteration_bounds = array<i64: 1>, scalar_prefetch = 0 : i64, scratch_operands = 0 : i64, tpu.core_type = #tpu.core_type<tc>, window_params = [{transform_indices = @transform_0, window_bounds = array<i64: 16, 25>}, {pipeline_mode = #tpu.pipeline_mode<synchronous>, transform_indices = @transform_1, window_bounds = array<i64: 25, 16>}, {pipeline_mode = #tpu.pipeline_mode<synchronous>, transform_indices = @transform_2, window_bounds = array<i64: 1, 16>}, {pipeline_mode = #tpu.pipeline_mode<synchronous>, transform_indices = @transform_3, window_bounds = array<i64: 16, 10>}, {pipeline_mode = #tpu.pipeline_mode<synchronous>, transform_indices = @transform_4, window_bounds = array<i64: 1, 10>}, {transform_indices = @transform_5, window_bounds = array<i64: 16, 10>}]} {
    %c0 = arith.constant 0 : index
    %c0_0 = arith.constant 0 : index
    %0 = vector.load %arg1[%c0, %c0_0] : memref<16x25xf32, #tpu.memory_space<vmem>>, vector<16x25xf32>
    %c0_1 = arith.constant 0 : index
    %c0_2 = arith.constant 0 : index
    %1 = vector.load %arg2[%c0_1, %c0_2] : memref<25x16xf32, #tpu.memory_space<vmem>>, vector<25x16xf32>
    %cst = arith.constant dense<0.000000e+00> : vector<16x16xf32>
    %2 = tpu.matmul %0, %1, %cst {dimension_numbers = #tpu.dot_dimension_numbers<[1], [0], [0], [1], [0, 0, 1, 1], [], []>} : vector<16x25xf32>, vector<25x16xf32>, vector<16x16xf32> -> vector<16x16xf32>
    %c0_3 = arith.constant 0 : index
    %c0_4 = arith.constant 0 : index
    %3 = vector.load %arg3[%c0_3, %c0_4] : memref<1x16xf32, #tpu.memory_space<vmem>>, vector<1x16xf32>
    %4 = vector.broadcast %3 : vector<1x16xf32> to vector<16x16xf32>
    %5 = arith.addf %2, %4 : vector<16x16xf32>
    %cst_5 = arith.constant 0.000000e+00 : f32
    %6 = vector.broadcast %cst_5 : f32 to vector<16x16xf32>
    %7 = arith.maximumf %5, %6 : vector<16x16xf32>
    %c0_6 = arith.constant 0 : index
    %c0_7 = arith.constant 0 : index
    %8 = vector.load %arg4[%c0_6, %c0_7] : memref<16x10xf32, #tpu.memory_space<vmem>>, vector<16x10xf32>
    %cst_8 = arith.constant dense<0.000000e+00> : vector<16x10xf32>
    %9 = tpu.matmul %7, %8, %cst_8 {dimension_numbers = #tpu.dot_dimension_numbers<[1], [0], [0], [1], [0, 0, 1, 1], [], []>} : vector<16x16xf32>, vector<16x10xf32>, vector<16x10xf32> -> vector<16x10xf32>
    %c0_9 = arith.constant 0 : index
    %c0_10 = arith.constant 0 : index
    %10 = vector.load %arg5[%c0_9, %c0_10] : memref<1x10xf32, #tpu.memory_space<vmem>>, vector<1x10xf32>
    %11 = vector.broadcast %10 : vector<1x10xf32> to vector<16x10xf32>
    %12 = arith.addf %9, %11 : vector<16x10xf32>
    %c0_11 = arith.constant 0 : index
    %c0_12 = arith.constant 0 : index
    %13 = vector.load %arg6[%c0_11, %c0_12] : memref<16x10xf32, #tpu.memory_space<vmem>>, vector<16x10xf32>
    tpu.vector_store %arg6[%c0_11, %c0_12], %12 {strides = array<i32>} : memref<16x10xf32, #tpu.memory_space<vmem>>, vector<16x10xf32>,
    return
  }
  func.func @transform_0(%arg0: i32) -> (i32, i32) {
    %c0_i32 = arith.constant 0 : i32
    %c0_i32_0 = arith.constant 0 : i32
    return %arg0, %c0_i32 : i32, i32
  }
  func.func @transform_1(%arg0: i32) -> (i32, i32) {
    %c0_i32 = arith.constant 0 : i32
    %c0_i32_0 = arith.constant 0 : i32
    %c0_i32_1 = arith.constant 0 : i32
    return %c0_i32, %c0_i32_0 : i32, i32
  }
  func.func @transform_2(%arg0: i32) -> (i32, i32) {
    %c0_i32 = arith.constant 0 : i32
    %c0_i32_0 = arith.constant 0 : i32
    %c0_i32_1 = arith.constant 0 : i32
    return %c0_i32, %c0_i32_0 : i32, i32
  }
  func.func @transform_3(%arg0: i32) -> (i32, i32) {
    %c0_i32 = arith.constant 0 : i32
    %c0_i32_0 = arith.constant 0 : i32
    %c0_i32_1 = arith.constant 0 : i32
    return %c0_i32, %c0_i32_0 : i32, i32
  }
  func.func @transform_4(%arg0: i32) -> (i32, i32) {
    %c0_i32 = arith.constant 0 : i32
    %c0_i32_0 = arith.constant 0 : i32
    %c0_i32_1 = arith.constant 0 : i32
    return %c0_i32, %c0_i32_0 : i32, i32
  }
  func.func @transform_5(%arg0: i32) -> (i32, i32) {
    %c0_i32 = arith.constant 0 : i32
    %c0_i32_0 = arith.constant 0 : i32
    return %arg0, %c0_i32 : i32, i32
  }
}

</mosaic_0001>

<llo_original>
// kernel: tpu_custom_call.1
$region0: #{tpu_custom_call.1}
  #allocation0 [shape = 'u32[]', space=smem, size = 0x4, offset = 0x4, fixed_abs, tag = 'smem constant byte address 0x4 - core index']
  #allocation1 [shape = 'u32[144,128]{1,0:T(1,128)}', space=vmem, size = 0x12000, scoped, tag = 'internal scratch']
  %s0 = inlined_call_operand.vmem [shape: f32[2,25], index: 0, kind: input, shape index: {}]
  %s1 = inlined_call_operand.vmem [shape: f32[25,16], index: 1, kind: input, shape index: {}]
  %s2 = inlined_call_operand.vmem [shape: f32[1,16], index: 2, kind: input, shape index: {}]
  %s3 = inlined_call_operand.vmem [shape: f32[16,10], index: 3, kind: input, shape index: {}]
  %s4 = inlined_call_operand.vmem [shape: f32[1,10], index: 4, kind: input, shape index: {}]
  %s5 = inlined_call_operand.hbm [shape: f32[2,10], index: 5, kind: output, shape index: {}]
  %s6 = sld [smem:[#allocation0]]
  $region30: #{tpu_custom_call.1} parent=0
    _
  %s8 = ssub.s32 1, %s6
  %s9 = scalar_select 0, %s8, %s6
  $region1: #{tpu_custom_call.1} parent=0
    #allocation2 [shape = 'u8[8192]{0}', space=vmem, size = 0x2000, scoped, tag = 'output window, operand 0, single buffered']
    #allocation3 [shape = 's32[1]{0}', space=sflag, size = 0x4, scoped, tag = 'scoped memory for tpu_custom_call.1']
    %10 = vsyncpa [#allocation3], 0
    // Predicated region
    $region2: #{tpu_custom_call.1} parent=1 // pred_check
      _
    $region3: #{tpu_custom_call.1} parent=1 // pred_check_branch
      %12 = sbr.rel (0) target = $region5
    $region4: #{tpu_custom_call.1} parent=1 // pred_region
      _
    $region5: #{tpu_custom_call.1} parent=1 // pred_fallthru
      _
    // Predicated region
    $region6: #{tpu_custom_call.1} parent=1 // pred_check
      _
    $region7: #{tpu_custom_call.1} parent=1 // pred_check_branch
      %14 = sbr.rel (0) target = $region9
    $region8: #{tpu_custom_call.1} parent=1 // pred_region
      _
    $region9: #{tpu_custom_call.1} parent=1 // pred_fallthru
      _
    // Predicated region
    $region10: #{tpu_custom_call.1} parent=1 // pred_check
      _
    $region11: #{tpu_custom_call.1} parent=1 // pred_check_branch
      %16 = sbr.rel (0) target = $region13
    $region12: #{tpu_custom_call.1} parent=1 // pred_region
      _
    $region13: #{tpu_custom_call.1} parent=1 // pred_fallthru
      _
    // Predicated region
    $region14: #{tpu_custom_call.1} parent=1 // pred_check
      _
    $region15: #{tpu_custom_call.1} parent=1 // pred_check_branch
      %18 = sbr.rel (0) target = $region17
    $region16: #{tpu_custom_call.1} parent=1 // pred_region
      _
    $region17: #{tpu_custom_call.1} parent=1 // pred_fallthru
      _
    // Predicated region
    $region18: #{tpu_custom_call.1} parent=1 // pred_check
      _
    $region19: #{tpu_custom_call.1} parent=1 // pred_check_branch
      %20 = sbr.rel (0) target = $region21
    $region20: #{tpu_custom_call.1} parent=1 // pred_region
      _
    $region21: #{tpu_custom_call.1} parent=1 // pred_fallthru
      _
    %v21 = vld [vmem:[%s0] sm:$0xff]
    %v22 = vld [vmem:[%s0 + $0x8] sm:$0xff]
    %v23 = vld [vmem:[%s1] sm:$0xff]
    %v24 = vld [vmem:[%s1 + $0x8] sm:$0xff]
    %v25 = vld [vmem:[%s1 + $0x10] sm:$0xff]
    %v26 = vld [vmem:[%s1 + $0x18] sm:$0x1]
    %v27 = vld [vmem:[%s2] sm:$0x1]
    %v29 = vlaneseq
    %v30 = vshrl.u32 %v29, 7
    %v31 = vsub.s32 0, %v30
    %v32 = vrot.slane %v27, %v31
    %vm34 = vcmask 203776
    %v36 = vsel %vm34, %v21, 0
    %v39 = vsel %vm34, %v22, 0
    %vm41 = vcmask 1040384
    %v43 = vsel %vm41, %v26, 0
    %45 = vmatprep.subr.mxu0 0.0
    %46 = vmatpush1.msra.mxu0 %v23
    %47 = vmatprep.subr.mxu0 0.0
    %48 = vmatpush1.msra.mxu0 %v24
    %49 = vmatprep.subr.mxu0 0.0
    %50 = vmatpush1.msra.mxu0 %v25
    %51 = vmatprep.subr.mxu0 0.0
    %52 = vmatpush1.msra.mxu0 %v43
    %53 = vmatprep.subr.mxu0 0.0
    %54 = vmatpush1.msra.mxu0 0.0
    %55 = vmatprep.subr.mxu0 0.0
    %56 = vmatpush1.msra.mxu0 0.0
    %57 = vmatprep.subr.mxu0 0.0
    %58 = vmatpush1.msra.mxu0 0.0
    %59 = vmatprep.subr.mxu0 0.0
    %60 = vmatpush1.msra.mxu0 0.0
    %61 = vmatprep.subr.mxu0 0.0
    %62 = vmatpush1.msra.mxu0 0.0
    %63 = vmatprep.subr.mxu0 0.0
    %64 = vmatpush1.msra.mxu0 0.0
    %65 = vmatprep.subr.mxu0 0.0
    %66 = vmatpush1.msra.mxu0 0.0
    %67 = vmatprep.subr.mxu0 0.0
    %68 = vmatpush1.msra.mxu0 0.0
    %69 = vmatprep.subr.mxu0 0.0
    %70 = vmatpush1.msra.mxu0 0.0
    %71 = vmatprep.subr.mxu0 0.0
    %72 = vmatpush1.msra.mxu0 0.0
    %73 = vmatprep.subr.mxu0 0.0
    %74 = vmatpush1.msra.mxu0 0.0
    %75 = vmatprep.subr.mxu0 0.0
    %76 = vmatpush1.msra.mxu0 0.0
    %77 = vmatprep.subr.mxu0 0.0
    %78 = vmatpush1.msra.mxu0 0.0
    %79 = vmatprep.subr.mxu0 0.0
    %80 = vmatpush1.msra.mxu0 0.0
    %81 = vmatprep.subr.mxu0 0.0
    %82 = vmatpush1.msra.mxu0 0.0
    %83 = vmatprep.subr.mxu0 0.0
    %84 = vmatpush1.msra.mxu0 0.0
    %85 = vmatprep.subr.mxu0 0.0
    %86 = vmatpush1.msra.mxu0 0.0
    %87 = vmatprep.subr.mxu0 0.0
    %88 = vmatpush1.msra.mxu0 0.0
    %89 = vmatprep.subr.mxu0 0.0
    %90 = vmatpush1.msra.mxu0 0.0
    %91 = vmatprep.subr.mxu0 0.0
    %92 = vmatpush1.msra.mxu0 0.0
    %93 = vmatprep.subr.mxu0 0.0
    %94 = vmatpush1.msra.mxu0 0.0
    %95 = vmatprep.subr.mxu0 0.0
    %96 = vmatpush1.msra.mxu0 0.0
    %97 = vmatprep.subr.mxu0 0.0
    %98 = vmatpush1.msra.mxu0 0.0
    %99 = vmatprep.subr.mxu0 0.0
    %100 = vmatpush1.msra.mxu0 0.0
    %101 = vmatprep.subr.mxu0 0.0
    %102 = vmatpush1.msra.mxu0 0.0
    %103 = vmatprep.subr.mxu0 0.0
    %104 = vmatpush1.msra.mxu0 0.0
    %105 = vmatprep.subr.mxu0 0.0
    %106 = vmatpush1.msra.mxu0 0.0
    %107 = vmatprep.subr.mxu0 0.0
    %108 = vmatpush1.msra.mxu0 0.0
    %109 = vmatprep.mubr.f32.mxu0 0.0
    %110 = vmatmul.mubr.f32.gmra.mrb[0].mxu0 %v36
    %v111 = vpop.f32.mrb[0].mxu0
    %v112 = vadd.f32 %v32, %v111
    %v113 = vpop.f32.mrb[0].mxu0
    %114 = vmatprep.mubr.f32.mxu0 0.0
    %115 = vmatmul.mubr.f32.gmra.mrb[0].mxu0 %v39
    %v116 = vpop.f32.mrb[0].mxu0
    %v117 = vadd.f32 %v32, %v116
    %v118 = vpop.f32.mrb[0].mxu0
    %119 = vdwg.mxu0
    %v120 = vmax.f32 %v112, 0.0
    %v121 = vmax.f32 %v117, 0.0
    %v122 = vld [vmem:[%s3] sm:$0xff]
    %v123 = vld [vmem:[%s3 + $0x8] sm:$0xff]
    %v124 = vld [vmem:[%s4] sm:$0x1]
    %v126 = vlaneseq
    %v127 = vshrl.u32 %v126, 7
    %v128 = vsub.s32 0, %v127
    %v129 = vrot.slane %v124, %v128
    %vm131 = vcmask 130048
    %v133 = vsel %vm131, %v120, 0
    %v136 = vsel %vm131, %v121, 0
    %138 = vmatprep.subr.mxu0 0.0
    %139 = vmatpush1.msra.mxu0 %v122
    %140 = vmatprep.subr.mxu0 0.0
    %141 = vmatpush1.msra.mxu0 %v123
    %142 = vmatprep.subr.mxu0 0.0
    %143 = vmatpush1.msra.mxu0 0.0
    %144 = vmatprep.subr.mxu0 0.0
    %145 = vmatpush1.msra.mxu0 0.0
    %146 = vmatprep.subr.mxu0 0.0
    %147 = vmatpush1.msra.mxu0 0.0
    %148 = vmatprep.subr.mxu0 0.0
    %149 = vmatpush1.msra.mxu0 0.0
    %150 = vmatprep.subr.mxu0 0.0
    %151 = vmatpush1.msra.mxu0 0.0
    %152 = vmatprep.subr.mxu0 0.0
    %153 = vmatpush1.msra.mxu0 0.0
    %154 = vmatprep.subr.mxu0 0.0
    %155 = vmatpush1.msra.mxu0 0.0
    %156 = vmatprep.subr.mxu0 0.0
    %157 = vmatpush1.msra.mxu0 0.0
    %158 = vmatprep.subr.mxu0 0.0
    %159 = vmatpush1.msra.mxu0 0.0
    %160 = vmatprep.subr.mxu0 0.0
    %161 = vmatpush1.msra.mxu0 0.0
    %162 = vmatprep.subr.mxu0 0.0
    %163 = vmatpush1.msra.mxu0 0.0
    %164 = vmatprep.subr.mxu0 0.0
    %165 = vmatpush1.msra.mxu0 0.0
    %166 = vmatprep.subr.mxu0 0.0
    %167 = vmatpush1.msra.mxu0 0.0
    %168 = vmatprep.subr.mxu0 0.0
    %169 = vmatpush1.msra.mxu0 0.0
    %170 = vmatprep.subr.mxu0 0.0
    %171 = vmatpush1.msra.mxu0 0.0
    %172 = vmatprep.subr.mxu0 0.0
    %173 = vmatpush1.msra.mxu0 0.0
    %174 = vmatprep.subr.mxu0 0.0
    %175 = vmatpush1.msra.mxu0 0.0
    %176 = vmatprep.subr.mxu0 0.0
    %177 = vmatpush1.msra.mxu0 0.0
    %178 = vmatprep.subr.mxu0 0.0
    %179 = vmatpush1.msra.mxu0 0.0
    %180 = vmatprep.subr.mxu0 0.0
    %181 = vmatpush1.msra.mxu0 0.0
    %182 = vmatprep.subr.mxu0 0.0
    %183 = vmatpush1.msra.mxu0 0.0
    %184 = vmatprep.subr.mxu0 0.0
    %185 = vmatpush1.msra.mxu0 0.0
    %186 = vmatprep.subr.mxu0 0.0
    %187 = vmatpush1.msra.mxu0 0.0
    %188 = vmatprep.subr.mxu0 0.0
    %189 = vmatpush1.msra.mxu0 0.0
    %190 = vmatprep.subr.mxu0 0.0
    %191 = vmatpush1.msra.mxu0 0.0
    %192 = vmatprep.subr.mxu0 0.0
    %193 = vmatpush1.msra.mxu0 0.0
    %194 = vmatprep.subr.mxu0 0.0
    %195 = vmatpush1.msra.mxu0 0.0
    %196 = vmatprep.subr.mxu0 0.0
    %197 = vmatpush1.msra.mxu0 0.0
    %198 = vmatprep.subr.mxu0 0.0
    %199 = vmatpush1.msra.mxu0 0.0
    %200 = vmatprep.subr.mxu0 0.0
    %201 = vmatpush1.msra.mxu0 0.0
    %202 = vmatprep.mubr.f32.mxu0 0.0
    %203 = vmatmul.mubr.f32.gmra.mrb[0].mxu0 %v133
    %v204 = vpop.f32.mrb[0].mxu0
    %v205 = vadd.f32 %v129, %v204
    %v206 = vpop.f32.mrb[0].mxu0
    %207 = vmatprep.mubr.f32.mxu0 0.0
    %208 = vmatmul.mubr.f32.gmra.mrb[0].mxu0 %v136
    %v209 = vpop.f32.mrb[0].mxu0
    %v210 = vadd.f32 %v129, %v209
    %v211 = vpop.f32.mrb[0].mxu0
    %212 = vdwg.mxu0
    %vm213 = vcmask 80896
    %214 = vst.msk [vmem:[#allocation2] sm:$0xff] %vm213, %v205
    %215 = vst.msk [vmem:[#allocation2 + $0x8] sm:$0xff] %vm213, %v210
    // Predicated region
    $region22: #{tpu_custom_call.1} parent=1 // pred_check
      _
    $region23: #{tpu_custom_call.1} parent=1 // pred_check_branch
      %217 = sbr.rel (0) target = $region25
    $region24: #{tpu_custom_call.1} parent=1 // pred_region
      %s219 = ssub.s32 256, 32
      %220 = vsyncadd [#allocation3], %s219
      %s221 = sshll.u32 [#allocation2], 4
      %s222 = int_to_ptr.vmem [resolvable:$true] %s221
      %227 = dma.vmem_to_hbm [thread:$0]  %s222, 32, %s5, [#allocation3], 32, 32, 2
    $region25: #{tpu_custom_call.1} parent=1 // pred_fallthru
      _
    // Predicated region
    $region26: #{tpu_custom_call.1} parent=1 // pred_check
      _
    $region27: #{tpu_custom_call.1} parent=1 // pred_check_branch
      %229 = sbr.rel (0) target = $region29
    $region28: #{tpu_custom_call.1} parent=1 // pred_region
      %230 = dma.done [#allocation3], 256
    $region29: #{tpu_custom_call.1} parent=1 // pred_fallthru
      _
    %231 = vsyncpa [#allocation3], 1

</llo_original>
